<compile_context>
chip_gen: v7x
topology: tpu7x:2x2x1
jax: 0.10.0
libtpu: 0.0.40
codegen_flags: <defaults>
</compile_context>

<pallas_src>
import jax
import jax.numpy as jnp
from jax.experimental import pallas as pl
from jax.experimental.pallas import tpu as pltpu


def _choose_tiles(bs: int, channels: int, hw: int, itemsize: int,
                  target_bytes: int = 2 << 20):
    """Pick (batch_tile, spatial_tile) so each block is ~target_bytes and the
    last dim stays lane-dense (multiple of 128 or the full extent)."""
    lane = 128
    row_bytes = channels * hw * itemsize  # one batch element

    # Largest divisor of bs whose block stays under the target size.
    tb = 1
    for d in range(bs, 0, -1):
        if bs % d == 0 and d * row_bytes <= target_bytes:
            tb = d
            break

    thw = hw
    if hw % lane == 0:
        n_chunks = hw // lane
        if tb == 1 and row_bytes > target_bytes:
            # Single batch element is already too big: bound the block with the
            # largest lane-dense spatial chunk that divides hw and fits.
            max_chunks = max(1, target_bytes // (channels * lane * itemsize))
            for d in range(min(max_chunks, n_chunks), 0, -1):
                if n_chunks % d == 0:
                    thw = d * lane
                    break
        elif bs // tb == 1 and n_chunks % 2 == 0:
            # Batch grid collapses to one step; split spatially so a v7x chip
            # (2 TensorCores) still has two parallel grid points to shard.
            thw = hw // 2
    return tb, thw


def _make_shuffle_kernel(groups: int):
    def shuffle_kernel(x_ref, o_ref):
        # x_ref / o_ref: (TB, C, THW). Out channel c*groups + g comes from in
        # channel g*cpg + c, i.e. exactly view->transpose(1,2)->view.
        tb, channels, thw = x_ref.shape
        cpg = channels // groups
        x = x_ref[...]
        x = x.reshape(tb, groups, cpg, thw)
        x = jnp.swapaxes(x, 1, 2)              # (TB, cpg, groups, THW)
        o_ref[...] = x.reshape(tb, channels, thw)

    return shuffle_kernel


def shuffle_channel(x: jax.Array, groups: int = 3) -> jax.Array:
    """Channel shuffle. x: (B, C, H, W) with C % groups == 0."""
    bs, channels, height, width = x.shape
    assert channels % groups == 0, "channels must be divisible by groups"
    hw = height * width

    # (B, C, H*W): spatial dim is the lane dim presented to the kernel.
    x_flat = x.reshape(bs, channels, hw)

    tb, thw = _choose_tiles(bs, channels, hw, jnp.dtype(x.dtype).itemsize)
    grid = (bs // tb, hw // thw)

    out_flat = pl.pallas_call(
        _make_shuffle_kernel(groups),
        out_shape=jax.ShapeDtypeStruct((bs, channels, hw), x.dtype),
        grid=grid,
        in_specs=[
            pl.BlockSpec((tb, channels, thw), lambda b, s: (b, 0, s)),
        ],
        out_specs=pl.BlockSpec((tb, channels, thw), lambda b, s: (b, 0, s)),
        compiler_params=pltpu.CompilerParams(
            dimension_semantics=("parallel", "parallel")
        ),
    )(x_flat)

    return out_flat.reshape(bs, channels, height, width)


def shuffle_channel_ref(x: jax.Array, groups: int = 3) -> jax.Array:
    """Pure-JAX reference mirroring the PyTorch forward exactly."""
    bs, channels, h, w = x.shape
    cpg = channels // groups
    x = x.reshape(bs, groups, cpg, h, w)
    x = jnp.transpose(x, (0, 2, 1, 3, 4))
    return x.reshape(bs, -1, h, w)


if __name__ == "__main__":
    # groups=3 requires channels divisible by 3.
    groups = 3
    key = jax.random.PRNGKey(0)
    x = jax.random.normal(key, (2, 6, 16, 16), dtype=jnp.float32)

    out = shuffle_channel(x, groups=groups)
    out = jax.block_until_ready(out)

    ref = shuffle_channel_ref(x, groups=groups)
    assert out.shape == ref.shape and out.dtype == ref.dtype
    assert bool(jnp.array_equal(out, ref))

    print("KERNEL_OK")
</pallas_src>

<mosaic_0001>
module attributes {stable_mosaic.version = 11 : i64} {
  func.func @shuffle_kernel(%arg0: i32, %arg1: i32, %arg2: memref<2x6x128xf32, #tpu.memory_space<vmem>>, %arg3: memref<2x6x128xf32, #tpu.memory_space<vmem>>) attributes {dimension_semantics = [#tpu.dimension_semantics<parallel>, #tpu.dimension_semantics<parallel>], iteration_bounds = array<i64: 1, 2>, scalar_prefetch = 0 : i64, scratch_operands = 0 : i64, tpu.core_type = #tpu.core_type<tc>, window_params = [{transform_indices = @transform_0, window_bounds = array<i64: 2, 6, 128>}, {transform_indices = @transform_1, window_bounds = array<i64: 2, 6, 128>}]} {
    %c0 = arith.constant 0 : index
    %c0_0 = arith.constant 0 : index
    %c0_1 = arith.constant 0 : index
    %0 = vector.load %arg2[%c0, %c0_0, %c0_1] : memref<2x6x128xf32, #tpu.memory_space<vmem>>, vector<2x6x128xf32>
    %1 = vector.shape_cast %0 : vector<2x6x128xf32> to vector<2x3x2x128xf32>
    %2 = tpu.transpose %1, [0, 2, 1, 3] : vector<2x3x2x128xf32> -> vector<2x2x3x128xf32>
    %3 = vector.shape_cast %2 : vector<2x2x3x128xf32> to vector<2x6x128xf32>
    %c0_2 = arith.constant 0 : index
    %c0_3 = arith.constant 0 : index
    %c0_4 = arith.constant 0 : index
    %4 = vector.load %arg3[%c0_2, %c0_3, %c0_4] : memref<2x6x128xf32, #tpu.memory_space<vmem>>, vector<2x6x128xf32>
    tpu.vector_store %arg3[%c0_2, %c0_3, %c0_4], %3 {strides = array<i32>} : memref<2x6x128xf32, #tpu.memory_space<vmem>>, vector<2x6x128xf32>,
    return
  }
  func.func @transform_0(%arg0: i32, %arg1: i32) -> (i32, i32, i32) {
    %c0_i32 = arith.constant 0 : i32
    %c0_i32_0 = arith.constant 0 : i32
    return %arg0, %c0_i32, %arg1 : i32, i32, i32
  }
  func.func @transform_1(%arg0: i32, %arg1: i32) -> (i32, i32, i32) {
    %c0_i32 = arith.constant 0 : i32
    %c0_i32_0 = arith.constant 0 : i32
    return %arg0, %c0_i32, %arg1 : i32, i32, i32
  }
}

</mosaic_0001>

<llo_original>
// kernel: tpu_custom_call.1
$region0: #{tpu_custom_call.1}
  #allocation0 [shape = 'u32[]', space=smem, size = 0x4, offset = 0x4, fixed_abs, tag = 'smem constant byte address 0x4 - core index']
  #allocation1 [shape = 'u32[144,128]{1,0:T(1,128)}', space=vmem, size = 0x12000, scoped, tag = 'internal scratch']
  %s0 = inlined_call_operand.vmem [shape: f32[2,6,256], index: 0, kind: input, shape index: {}]
  %s1 = inlined_call_operand.vmem [shape: f32[2,6,256], index: 1, kind: output, shape index: {}]
  %s2 = sld [smem:[#allocation0]]
  $region109: #{tpu_custom_call.1} parent=0
    _
  %s4 = ssub.s32 1, %s2
  %s5 = scalar_select 0, %s4, %s2
  $region1: #{tpu_custom_call.1} parent=0
    #allocation2 [shape = 'u8[16384]{0}', space=vmem, size = 0x4000, scoped, tag = 'input window, operand 0']
    #allocation3 [shape = 'u8[16384]{0}', space=vmem, size = 0x4000, scoped, tag = 'output window, operand 0']
    loop: start=0, step=1, limit=4
    $region2: #{tpu_custom_call.1} parent=1 // loop_pre_header
      _
    $region3: #{tpu_custom_call.1} parent=1 // loop_header
      %s7 = sphi 0, %s11
      %p8 = scmp.ge.s32.totalorder %s7, 4
      %s14 = sphi 0, %s26
      %s15 = sphi 0, %s22
      %s16 = sphi 0, %s14
      %s17 = sphi 0, %s15
      %s18 = sphi 0, %s16
      %s19 = sphi 0, %s17
      %s31 = sphi 0, %s33
      %s34 = sphi 0, %s31
      %s35 = sphi 0, %s34
      %s51 = sphi 0, %s35
      %s59 = sphi 0, %s61
      %s62 = sphi 0, %s59
      %s63 = sphi 0, %s62
      %s79 = sphi 0, %s63
    $region4: #{tpu_custom_call.1} parent=1 // loop_header_branch
      %10 = sbr.rel (%p8) target = $region8
    $region5: #{tpu_custom_call.1} parent=1 // loop_body
      %s12 = ssub.s32 %s7, 1
      %s13 = ssub.s32 %s7, 2
      %s20 = sadd.s32 1, %s15
      %p21 = scmp.ge.s32.totalorder %s20, 2
      %s22 = scalar_select %p21, 0, %s20
      %s23 = sadd.s32 1, %s14
      %s24 = scalar_select %p21, %s23, %s14
      %p25 = scmp.ge.s32.totalorder %s24, 1
      %s26 = scalar_select %p25, 0, %s24
      %s27 = ssub.s32 %s14, %s26
      %s28 = ssub.s32 %s15, %s22
      %s29 = sor.u32 %s27, %s28
      %p30 = scmp.eq.s32.totalorder %s29, 0
      %s32 = sadd.s32 %s31, 1
      %s33 = scalar_select %p30, %s31, %s32
      %p36 = pneg %p30
      %p37 = scmp.eq.s32.totalorder %s7, 1
      %p38 = por %p36, %p37
      %p39 = scmp.ne.s32.totalorder %s31, %s34
      %p40 = scmp.eq.s32.totalorder %s7, 0
      %p41 = por %p39, %p40
      %p42 = scmp.ne.s32.totalorder %s31, %s34
      %p43 = scmp.eq.s32.totalorder %s12, 1
      %p44 = por %p42, %p43
      %p45 = scmp.ne.s32.totalorder %s34, %s35
      %p46 = scmp.eq.s32.totalorder %s12, 0
      %p47 = por %p45, %p46
      %p48 = scmp.ne.s32.totalorder %s34, %s35
      %p49 = scmp.eq.s32.totalorder %s13, 1
      %p50 = por %p48, %p49
      %p52 = scmp.ne.s32.totalorder %s35, %s51
      %p53 = scmp.eq.s32.totalorder %s13, 0
      %p54 = por %p52, %p53
      %s55 = ssub.s32 %s14, %s26
      %s56 = ssub.s32 %s15, %s22
      %s57 = sor.u32 %s55, %s56
      %p58 = scmp.eq.s32.totalorder %s57, 0
      %s60 = sadd.s32 %s59, 1
      %s61 = scalar_select %p58, %s59, %s60
      %p64 = pneg %p58
      %p65 = scmp.eq.s32.totalorder %s7, 1
      %p66 = por %p64, %p65
      %p67 = scmp.ne.s32.totalorder %s59, %s62
      %p68 = scmp.eq.s32.totalorder %s7, 0
      %p69 = por %p67, %p68
      %p70 = scmp.ne.s32.totalorder %s59, %s62
      %p71 = scmp.eq.s32.totalorder %s12, 1
      %p72 = por %p70, %p71
      %p73 = scmp.ne.s32.totalorder %s62, %s63
      %p74 = scmp.eq.s32.totalorder %s12, 0
      %p75 = por %p73, %p74
      %p76 = scmp.ne.s32.totalorder %s62, %s63
      %p77 = scmp.eq.s32.totalorder %s13, 1
      %p78 = por %p76, %p77
      %p80 = scmp.ne.s32.totalorder %s63, %s79
      %p81 = scmp.eq.s32.totalorder %s13, 0
      %p82 = por %p80, %p81
      %p83 = scmp.le.s32.totalorder 1, %s7
      %p84 = scmp.lt.s32.totalorder %s7, 3
      %p85 = pnand %p83, %p84
      %p86 = pneg %p85
      // Predicated region
      $region9: #{tpu_custom_call.1} parent=5 // pred_check
        _
      $region10: #{tpu_custom_call.1} parent=5 // pred_check_branch
        %88 = sbr.rel (%p85) target = $region12
      $region11: #{tpu_custom_call.1} parent=5 // pred_region
        %s89 = ssub.s32 %s7, 1
      $region12: #{tpu_custom_call.1} parent=5 // pred_fallthru
        _
      %p90 = scmp.lt.s32.totalorder %s7, 2
      // Predicated region
      $region13: #{tpu_custom_call.1} parent=5 // pred_check
        %p91 = pneg %p90
      $region14: #{tpu_custom_call.1} parent=5 // pred_check_branch
        %93 = sbr.rel (%p91) target = $region16
      $region15: #{tpu_custom_call.1} parent=5 // pred_region
        // Predicated region
        $region17: #{tpu_custom_call.1} parent=15 // pred_check
          %p94 = pneg %p41
        $region18: #{tpu_custom_call.1} parent=15 // pred_check_branch
          %96 = sbr.rel (%p94) target = $region20
        $region19: #{tpu_custom_call.1} parent=15 // pred_region
          %s97 = sand.u32 %s31, 1
          %s98 = sand.u32 %s31, 1
          %s99 = smul.addr %s98, 16
          %s100 = scalar_lea.vmem [#allocation2], %s99
          %s101 = smul.u32 2, %s14
          %s102 = smul.addr %s101, 2
          %s103 = sadd.s32 %s15, %s102
          %s104 = smul.addr %s103, 8
          %s105 = scalar_lea.vmem %s0, %s104
          // Predicated region
          $region21: #{tpu_custom_call.1} parent=19 // pred_check
            _
          $region22: #{tpu_custom_call.1} parent=19 // pred_check_branch
            %107 = sbr.rel (0) target = $region24
          $region23: #{tpu_custom_call.1} parent=19 // pred_region
            // Predicated region
            $region25: #{tpu_custom_call.1} parent=23 // pred_check
              _
            $region26: #{tpu_custom_call.1} parent=23 // pred_check_branch
              %109 = sbr.rel (0) target = $region28
            $region27: #{tpu_custom_call.1} parent=23 // pred_region
              // Predicated region
              $region40: #{tpu_custom_call.1} parent=27 // pred_check
                _
              $region41: #{tpu_custom_call.1} parent=27 // pred_check_branch
                %126 = sbr.rel (0) target = $region43
              $region42: #{tpu_custom_call.1} parent=27 // pred_region
                loop: start=0, step=1, limit=1
                $region44: #{tpu_custom_call.1} parent=42 // loop_pre_header
                  _
                $region45: #{tpu_custom_call.1} parent=42 // loop_header
                  %s128 = sphi 0, %s132
                  %p129 = scmp.ge.s32.totalorder %s128, 1
                  %s133 = sphi %s105, %s105
                  %s134 = sphi %s100, %s100
                $region46: #{tpu_custom_call.1} parent=42 // loop_header_branch
                  %131 = sbr.rel (%p129) target = $region50
                $region47: #{tpu_custom_call.1} parent=42 // loop_body
                  %v135 = vld [vmem:[%s133] sm:$0xff]
                  %136 = vst [vmem:[%s134] sm:$0xff] %v135
                  %v137 = vld [vmem:[%s133 + $0x10] sm:$0xff]
                  %138 = vst [vmem:[%s134 + $0x8] sm:$0xff] %v137
                $region48: #{tpu_custom_call.1} parent=42 // loop_footer
                  %s132 = sadd.s32 1, %s128
                $region49: #{tpu_custom_call.1} parent=42 // loop_footer_branch
                  %127 = sbr.rel target = $region45
                $region50: #{tpu_custom_call.1} parent=42 // loop_exit
                  _
              $region43: #{tpu_custom_call.1} parent=27 // pred_fallthru
                _
              // Predicated region
              $region51: #{tpu_custom_call.1} parent=27 // pred_check
                _
              $region52: #{tpu_custom_call.1} parent=27 // pred_check_branch
                %140 = sbr.rel target = $region54
              $region53: #{tpu_custom_call.1} parent=27 // pred_region
                _
              $region54: #{tpu_custom_call.1} parent=27 // pred_fallthru
                _
            $region28: #{tpu_custom_call.1} parent=23 // pred_fallthru
              _
            // Predicated region
            $region29: #{tpu_custom_call.1} parent=23 // pred_check
              _
            $region30: #{tpu_custom_call.1} parent=23 // pred_check_branch
              %111 = sbr.rel target = $region32
            $region31: #{tpu_custom_call.1} parent=23 // pred_region
              loop: start=0, step=1, limit=1
              $region33: #{tpu_custom_call.1} parent=31 // loop_pre_header
                _
              $region34: #{tpu_custom_call.1} parent=31 // loop_header
                %s114 = sphi 0, %s118
                %p115 = scmp.ge.s32.totalorder %s114, 1
                %s119 = sphi %s105, %s105
                %s120 = sphi %s100, %s100
              $region35: #{tpu_custom_call.1} parent=31 // loop_header_branch
                %117 = sbr.rel (%p115) target = $region39
              $region36: #{tpu_custom_call.1} parent=31 // loop_body
                %v121 = vld [vmem:[%s119] sm:$0xff]
                %122 = vst [vmem:[%s120] sm:$0xff] %v121
                %v123 = vld [vmem:[%s119 + $0x10] sm:$0xff]
                %124 = vst [vmem:[%s120 + $0x8] sm:$0xff] %v123
              $region37: #{tpu_custom_call.1} parent=31 // loop_footer
                %s118 = sadd.s32 1, %s114
              $region38: #{tpu_custom_call.1} parent=31 // loop_footer_branch
                %113 = sbr.rel target = $region34
              $region39: #{tpu_custom_call.1} parent=31 // loop_exit
                _
            $region32: #{tpu_custom_call.1} parent=23 // pred_fallthru
              _
          $region24: #{tpu_custom_call.1} parent=19 // pred_fallthru
            _
          %141 = vnop
        $region20: #{tpu_custom_call.1} parent=15 // pred_fallthru
          _
      $region16: #{tpu_custom_call.1} parent=5 // pred_fallthru
        _
      %p142 = scmp.le.s32.totalorder 1, %s7
      %p143 = scmp.lt.s32.totalorder %s7, 3
      %p144 = pnand %p142, %p143
      %p145 = pneg %p144
      // Predicated region
      $region55: #{tpu_custom_call.1} parent=5 // pred_check
        _
      $region56: #{tpu_custom_call.1} parent=5 // pred_check_branch
        %147 = sbr.rel (%p144) target = $region58
      $region57: #{tpu_custom_call.1} parent=5 // pred_region
        %s148 = ssub.s32 %s7, 1
        %s149 = sand.u32 %s34, 1
        %s150 = sand.u32 %s34, 1
        %s151 = smul.addr %s150, 16
        %s152 = scalar_lea.vmem [#allocation2], %s151
        // Predicated region
        $region59: #{tpu_custom_call.1} parent=57 // pred_check
          %p153 = pneg %p47
        $region60: #{tpu_custom_call.1} parent=57 // pred_check_branch
          %155 = sbr.rel (%p153) target = $region62
        $region61: #{tpu_custom_call.1} parent=57 // pred_region
          _
        $region62: #{tpu_custom_call.1} parent=57 // pred_fallthru
          _
        %s156 = sand.u32 %s34, 1
        %s157 = sand.u32 %s34, 1
        %s158 = smul.addr %s157, 16
        %s159 = scalar_lea.vmem [#allocation2], %s158
        %p160 = pneg %p47
        %p161 = pneg %p44
        %p162 = pneg %p75
        %p163 = pneg %p72
        %s164 = sand.u32 %s62, 1
        %s165 = sand.u32 %s62, 1
        %s166 = smul.addr %s165, 16
        %s167 = scalar_lea.vmem [#allocation3], %s166
        %s168 = smul.u32 2, %s16
        %s169 = smul.u32 2, %s16
        %v170 = vld [vmem:[%s152] sm:$0x3f]
        %v171 = vld [vmem:[%s152 + $0x8] sm:$0x3f]
        %v174 = vcombine.high %v170, %v170
        %v176 = vunpack.c.l.s4 1983009808
        %v177 = vunpack.c.0.s8 %v176
        %v178 = vlaneseq
        %v179 = vshrl.u32 %v178, 7
        %v180 = vsub.s32 %v177, %v179
        %v181 = vrot.slane %v170, %v180
        %v183 = vunpack.c.l.s4 1983009808
        %v184 = vunpack.c.0.s8 %v183
        %v185 = vlaneseq
        %v186 = vshrl.u32 %v185, 7
        %v187 = vsub.s32 %v184, %v186
        %v188 = vrot.slane %v174, %v187
        %v189 = vcombine.high %v181, %v181
        %v190 = vcombine.high %v171, %v171
        %v192 = vunpack.c.l.s4 1983009808
        %v193 = vunpack.c.0.s8 %v192
        %v194 = vlaneseq
        %v195 = vshrl.u32 %v194, 7
        %v196 = vsub.s32 %v193, %v195
        %v197 = vrot.slane %v171, %v196
        %v199 = vunpack.c.l.s4 1983009808
        %v200 = vunpack.c.0.s8 %v199
        %v201 = vlaneseq
        %v202 = vshrl.u32 %v201, 7
        %v203 = vsub.s32 %v200, %v202
        %v204 = vrot.slane %v190, %v203
        %v205 = vcombine.high %v197, %v197
        %v210 = vcombine.low %v181, %v189
        %v212 = vunpack.c.l.s4 1934713408
        %v213 = vunpack.c.0.s8 %v212
        %v214 = vlaneseq
        %v215 = vshrl.u32 %v214, 7
        %v216 = vsub.s32 %v213, %v215
        %v217 = vrot.slane %v210, %v216
        %v218 = vcombine.high %v217, 0.0
        %v221 = vunpack.c.l.s4 1934713408
        %v222 = vunpack.c.0.s8 %v221
        %v223 = vlaneseq
        %v224 = vshrl.u32 %v223, 7
        %v225 = vsub.s32 %v222, %v224
        %v226 = vrot.slane %v188, %v225
        %v227 = vcombine.high %v226, 0.0
        %v228 = vcombine.low %v197, %v205
        %v230 = vunpack.c.l.s4 1934713408
        %v231 = vunpack.c.0.s8 %v230
        %v232 = vlaneseq
        %v233 = vshrl.u32 %v232, 7
        %v234 = vsub.s32 %v231, %v233
        %v235 = vrot.slane %v228, %v234
        %v236 = vcombine.high %v235, 0.0
        %v239 = vunpack.c.l.s4 1934713408
        %v240 = vunpack.c.0.s8 %v239
        %v241 = vlaneseq
        %v242 = vshrl.u32 %v241, 7
        %v243 = vsub.s32 %v240, %v242
        %v244 = vrot.slane %v204, %v243
        %v245 = vcombine.high %v244, 0.0
        %v255 = vunpack.c.l.s4 1966171168
        %v256 = vunpack.c.0.s8 %v255
        %v257 = vlaneseq
        %v258 = vshrl.u32 %v257, 7
        %v259 = vsub.s32 %v256, %v258
        %v260 = vrot.slane %v217, %v259
        %v261 = vcombine.high %v260, %v260
        %v263 = vunpack.c.l.s4 1966171168
        %v264 = vunpack.c.0.s8 %v263
        %v265 = vlaneseq
        %v266 = vshrl.u32 %v265, 7
        %v267 = vsub.s32 %v264, %v266
        %v268 = vrot.slane %v226, %v267
        %v270 = vunpack.c.l.s4 1966171168
        %v271 = vunpack.c.0.s8 %v270
        %v272 = vlaneseq
        %v273 = vshrl.u32 %v272, 7
        %v274 = vsub.s32 %v271, %v273
        %v275 = vrot.slane %v218, %v274
        %v276 = vcombine.high %v275, %v275
        %v278 = vunpack.c.l.s4 1966171168
        %v279 = vunpack.c.0.s8 %v278
        %v280 = vlaneseq
        %v281 = vshrl.u32 %v280, 7
        %v282 = vsub.s32 %v279, %v281
        %v283 = vrot.slane %v227, %v282
        %v285 = vunpack.c.l.s4 1966171168
        %v286 = vunpack.c.0.s8 %v285
        %v287 = vlaneseq
        %v288 = vshrl.u32 %v287, 7
        %v289 = vsub.s32 %v286, %v288
        %v290 = vrot.slane %v235, %v289
        %v291 = vcombine.high %v290, %v290
        %v293 = vunpack.c.l.s4 1966171168
        %v294 = vunpack.c.0.s8 %v293
        %v295 = vlaneseq
        %v296 = vshrl.u32 %v295, 7
        %v297 = vsub.s32 %v294, %v296
        %v298 = vrot.slane %v244, %v297
        %v300 = vunpack.c.l.s4 1966171168
        %v301 = vunpack.c.0.s8 %v300
        %v302 = vlaneseq
        %v303 = vshrl.u32 %v302, 7
        %v304 = vsub.s32 %v301, %v303
        %v305 = vrot.slane %v236, %v304
        %v306 = vcombine.high %v305, %v305
        %v308 = vunpack.c.l.s4 1966171168
        %v309 = vunpack.c.0.s8 %v308
        %v310 = vlaneseq
        %v311 = vshrl.u32 %v310, 7
        %v312 = vsub.s32 %v309, %v311
        %v313 = vrot.slane %v245, %v312
        %v314 = vcombine.low %v260, %v261
        %v315 = vcombine.low %v268, %v275
        %v316 = vcombine.low %v276, %v283
        %v318 = vunpack.c.l.s4 1966171168
        %v319 = vunpack.c.0.s8 %v318
        %v320 = vlaneseq
        %v321 = vshrl.u32 %v320, 7
        %v322 = vsub.s32 %v319, %v321
        %v323 = vrot.slane %v314, %v322
        %v325 = vunpack.c.l.s4 1966171168
        %v326 = vunpack.c.0.s8 %v325
        %v327 = vlaneseq
        %v328 = vshrl.u32 %v327, 7
        %v329 = vsub.s32 %v326, %v328
        %v330 = vrot.slane %v315, %v329
        %v332 = vunpack.c.l.s4 1966171168
        %v333 = vunpack.c.0.s8 %v332
        %v334 = vlaneseq
        %v335 = vshrl.u32 %v334, 7
        %v336 = vsub.s32 %v333, %v335
        %v337 = vrot.slane %v316, %v336
        %v338 = vcombine.low %v323, %v330
        %v340 = vunpack.c.l.s4 1966171168
        %v341 = vunpack.c.0.s8 %v340
        %v342 = vlaneseq
        %v343 = vshrl.u32 %v342, 7
        %v344 = vsub.s32 %v341, %v343
        %v345 = vrot.slane %v338, %v344
        %v347 = vunpack.c.l.s4 1966171168
        %v348 = vunpack.c.0.s8 %v347
        %v349 = vlaneseq
        %v350 = vshrl.u32 %v349, 7
        %v351 = vsub.s32 %v348, %v350
        %v352 = vrot.slane %v337, %v351
        %v353 = vcombine.low %v345, %v352
        %v354 = vcombine.low %v290, %v291
        %v355 = vcombine.low %v298, %v305
        %v356 = vcombine.low %v306, %v313
        %v358 = vunpack.c.l.s4 1966171168
        %v359 = vunpack.c.0.s8 %v358
        %v360 = vlaneseq
        %v361 = vshrl.u32 %v360, 7
        %v362 = vsub.s32 %v359, %v361
        %v363 = vrot.slane %v354, %v362
        %v365 = vunpack.c.l.s4 1966171168
        %v366 = vunpack.c.0.s8 %v365
        %v367 = vlaneseq
        %v368 = vshrl.u32 %v367, 7
        %v369 = vsub.s32 %v366, %v368
        %v370 = vrot.slane %v355, %v369
        %v372 = vunpack.c.l.s4 1966171168
        %v373 = vunpack.c.0.s8 %v372
        %v374 = vlaneseq
        %v375 = vshrl.u32 %v374, 7
        %v376 = vsub.s32 %v373, %v375
        %v377 = vrot.slane %v356, %v376
        %v378 = vcombine.low %v363, %v370
        %v380 = vunpack.c.l.s4 1966171168
        %v381 = vunpack.c.0.s8 %v380
        %v382 = vlaneseq
        %v383 = vshrl.u32 %v382, 7
        %v384 = vsub.s32 %v381, %v383
        %v385 = vrot.slane %v378, %v384
        %v387 = vunpack.c.l.s4 1966171168
        %v388 = vunpack.c.0.s8 %v387
        %v389 = vlaneseq
        %v390 = vshrl.u32 %v389, 7
        %v391 = vsub.s32 %v388, %v390
        %v392 = vrot.slane %v377, %v391
        %v393 = vcombine.low %v385, %v392
        %396 = vst [vmem:[%s167] sm:$0x3f] %v353
        %397 = vst [vmem:[%s167 + $0x8] sm:$0x3f] %v393
        %s398 = sand.u32 %s62, 1
        %s399 = sand.u32 %s62, 1
        %s400 = smul.addr %s399, 16
        %s401 = scalar_lea.vmem [#allocation3], %s400
        // Predicated region
        $region63: #{tpu_custom_call.1} parent=57 // pred_check
          %p402 = pneg %p72
        $region64: #{tpu_custom_call.1} parent=57 // pred_check_branch
          %404 = sbr.rel (%p402) target = $region66
        $region65: #{tpu_custom_call.1} parent=57 // pred_region
          %s405 = smul.u32 2, %s16
          %s406 = smul.addr %s405, 2
          %s407 = sadd.s32 %s17, %s406
          %s408 = smul.addr %s407, 8
          %s409 = scalar_lea.vmem %s1, %s408
          // Predicated region
          $region67: #{tpu_custom_call.1} parent=65 // pred_check
            _
          $region68: #{tpu_custom_call.1} parent=65 // pred_check_branch
            %411 = sbr.rel (0) target = $region70
          $region69: #{tpu_custom_call.1} parent=65 // pred_region
            // Predicated region
            $region71: #{tpu_custom_call.1} parent=69 // pred_check
              _
            $region72: #{tpu_custom_call.1} parent=69 // pred_check_branch
              %413 = sbr.rel (0) target = $region74
            $region73: #{tpu_custom_call.1} parent=69 // pred_region
              // Predicated region
              $region86: #{tpu_custom_call.1} parent=73 // pred_check
                _
              $region87: #{tpu_custom_call.1} parent=73 // pred_check_branch
                %430 = sbr.rel (0) target = $region89
              $region88: #{tpu_custom_call.1} parent=73 // pred_region
                loop: start=0, step=1, limit=1
                $region90: #{tpu_custom_call.1} parent=88 // loop_pre_header
                  _
                $region91: #{tpu_custom_call.1} parent=88 // loop_header
                  %s432 = sphi 0, %s436
                  %p433 = scmp.ge.s32.totalorder %s432, 1
                  %s437 = sphi %s401, %s401
                  %s438 = sphi %s409, %s409
                $region92: #{tpu_custom_call.1} parent=88 // loop_header_branch
                  %435 = sbr.rel (%p433) target = $region96
                $region93: #{tpu_custom_call.1} parent=88 // loop_body
                  %v439 = vld [vmem:[%s437] sm:$0xff]
                  %440 = vst [vmem:[%s438] sm:$0xff] %v439
                  %v441 = vld [vmem:[%s437 + $0x8] sm:$0xff]
                  %442 = vst [vmem:[%s438 + $0x10] sm:$0xff] %v441
                $region94: #{tpu_custom_call.1} parent=88 // loop_footer
                  %s436 = sadd.s32 1, %s432
                $region95: #{tpu_custom_call.1} parent=88 // loop_footer_branch
                  %431 = sbr.rel target = $region91
                $region96: #{tpu_custom_call.1} parent=88 // loop_exit
                  _
              $region89: #{tpu_custom_call.1} parent=73 // pred_fallthru
                _
              // Predicated region
              $region97: #{tpu_custom_call.1} parent=73 // pred_check
                _
              $region98: #{tpu_custom_call.1} parent=73 // pred_check_branch
                %444 = sbr.rel target = $region100
              $region99: #{tpu_custom_call.1} parent=73 // pred_region
                _
              $region100: #{tpu_custom_call.1} parent=73 // pred_fallthru
                _
            $region74: #{tpu_custom_call.1} parent=69 // pred_fallthru
              _
            // Predicated region
            $region75: #{tpu_custom_call.1} parent=69 // pred_check
              _
            $region76: #{tpu_custom_call.1} parent=69 // pred_check_branch
              %415 = sbr.rel target = $region78
            $region77: #{tpu_custom_call.1} parent=69 // pred_region
              loop: start=0, step=1, limit=1
              $region79: #{tpu_custom_call.1} parent=77 // loop_pre_header
                _
              $region80: #{tpu_custom_call.1} parent=77 // loop_header
                %s418 = sphi 0, %s422
                %p419 = scmp.ge.s32.totalorder %s418, 1
                %s423 = sphi %s401, %s401
                %s424 = sphi %s409, %s409
              $region81: #{tpu_custom_call.1} parent=77 // loop_header_branch
                %421 = sbr.rel (%p419) target = $region85
              $region82: #{tpu_custom_call.1} parent=77 // loop_body
                %v425 = vld [vmem:[%s423] sm:$0xff]
                %426 = vst [vmem:[%s424] sm:$0xff] %v425
                %v427 = vld [vmem:[%s423 + $0x8] sm:$0xff]
                %428 = vst [vmem:[%s424 + $0x10] sm:$0xff] %v427
              $region83: #{tpu_custom_call.1} parent=77 // loop_footer
                %s422 = sadd.s32 1, %s418
              $region84: #{tpu_custom_call.1} parent=77 // loop_footer_branch
                %417 = sbr.rel target = $region80
              $region85: #{tpu_custom_call.1} parent=77 // loop_exit
                _
            $region78: #{tpu_custom_call.1} parent=69 // pred_fallthru
              _
          $region70: #{tpu_custom_call.1} parent=65 // pred_fallthru
            _
          %445 = vnop
        $region66: #{tpu_custom_call.1} parent=57 // pred_fallthru
          _
      $region58: #{tpu_custom_call.1} parent=5 // pred_fallthru
        _
      %p446 = scmp.le.s32.totalorder 2, %s7
      // Predicated region
      $region101: #{tpu_custom_call.1} parent=5 // pred_check
        %p447 = pneg %p446
      $region102: #{tpu_custom_call.1} parent=5 // pred_check_branch
        %449 = sbr.rel (%p447) target = $region104
      $region103: #{tpu_custom_call.1} parent=5 // pred_region
        %s450 = ssub.s32 %s7, 2
        // Predicated region
        $region105: #{tpu_custom_call.1} parent=103 // pred_check
          %p451 = pneg %p78
        $region106: #{tpu_custom_call.1} parent=103 // pred_check_branch
          %453 = sbr.rel (%p451) target = $region108
        $region107: #{tpu_custom_call.1} parent=103 // pred_region
          %s454 = sand.u32 %s63, 1
          %s455 = sand.u32 %s63, 1
          %s456 = smul.addr %s455, 16
          %s457 = scalar_lea.vmem [#allocation3], %s456
        $region108: #{tpu_custom_call.1} parent=103 // pred_fallthru
          _
      $region104: #{tpu_custom_call.1} parent=5 // pred_fallthru
        _
    $region6: #{tpu_custom_call.1} parent=1 // loop_footer
      %s11 = sadd.s32 1, %s7
    $region7: #{tpu_custom_call.1} parent=1 // loop_footer_branch
      %6 = sbr.rel target = $region3
    $region8: #{tpu_custom_call.1} parent=1 // loop_exit
      _

</llo_original>
